<compile_context>
chip_gen: v6e
topology: v6e:2x2x1
jax: 0.10.0
libtpu: 0.0.40
codegen_flags: <defaults>
</compile_context>

<pallas_src>
import jax
import jax.numpy as jnp
from jax import lax
from jax.experimental import pallas as pl
from jax.experimental.pallas import tpu as pltpu

EPS = 1e-5           # BatchNorm1d default eps
LAYER_DIMS = [(11, 128), (128, 64), (64, 32), (32, 16), (16, 2)]


def _mlp_kernel(x_ref,
                w1, b1, w2, b2, w3, b3, w4, b4, w5t, b5,
                out_ref):
    """Whole (BN-folded) MLP forward for one batch tile, entirely in VMEM."""
    cdt = x_ref.dtype  # compute dtype for the MXU operands (bf16 or f32)

    def layer(h, w_ref, b_ref):
        # f32 accumulation, f32 bias + ReLU, cast back to the MXU dtype.
        y = jnp.dot(h, w_ref[...], preferred_element_type=jnp.float32) + b_ref[...]
        return jnp.maximum(y, 0.0).astype(cdt)

    # Dropout layers are identity in eval mode (no-op here).
    h = x_ref[...]
    h = layer(h, w1, b1)
    h = layer(h, w2, b2)
    h = layer(h, w3, b3)
    h = layer(h, w4, b4)

    # Final layer computed feature-major: contract dim-1 of both operands
    # ("NT" matmul) -> (8, tb) result, rows 0:2 valid.  This makes the output
    # store lane-dense (last dim = tb, a multiple of 128) with no transpose.
    logits = lax.dot_general(w5t[...], h, (((1,), (1,)), ((), ())),
                             preferred_element_type=jnp.float32) + b5[...]
    out_ref[...] = logits[0:2, :]


def _xavier_uniform(key, fan_in, fan_out):
    bound = (6.0 / (fan_in + fan_out)) ** 0.5
    # Generated directly in (in, out) layout == PyTorch weight.T; the xavier
    # bound is symmetric in fan_in/fan_out so the distribution is identical.
    return jax.random.uniform(key, (fan_in, fan_out), jnp.float32, -bound, bound)


def init_params(key):
    """Deterministic parameters mirroring the PyTorch __init__."""
    keys = jax.random.split(key, len(LAYER_DIMS))
    params = []
    for (fin, fout), k in zip(LAYER_DIMS, keys):
        w = _xavier_uniform(k, fin, fout)
        b = jnp.zeros((fout,), jnp.float32)          # nn.init.constant_(bias, 0)
        params.append((w, b))
    # BatchNorm1d defaults: gamma=1, beta=0, running_mean=0, running_var=1
    bn = []
    for (_, fout) in LAYER_DIMS[:-1]:
        bn.append((jnp.ones((fout,), jnp.float32),
                   jnp.zeros((fout,), jnp.float32),
                   jnp.zeros((fout,), jnp.float32),
                   jnp.ones((fout,), jnp.float32)))
    return params, bn


def _fold_bn(w, b, gamma, beta, mean, var):
    """Fold eval-mode BatchNorm1d into the preceding Linear."""
    scale = gamma * lax.rsqrt(var + EPS)               # (fout,)
    w_f = w * scale[None, :]                           # (fin, fout)
    b_f = (b - mean) * scale + beta                    # (fout,)
    return w_f, b_f


def _round_up(x, m):
    return (x + m - 1) // m * m


def _default_tile_batch():
    """Generation-aware batch-tile default (best effort; safe fallback 4096)."""
    try:
        kind = jax.devices()[0].device_kind.lower()
    except Exception:
        return 4096
    if "v6" in kind:
        return 8192        # v6e: 128 MiB VMEM, almost purely overhead-bound
    return 4096            # v5e (scoped limit raised below) and v7x (64 MiB VMEM)


def anomaly_detector_forward(x, params, bn, *, tile_batch=None,
                             compute_dtype=jnp.bfloat16):
    """x: (N, 11) float32 -> logits (N, 2) float32 (eval-mode forward)."""
    n, fin = x.shape
    assert fin == 11
    if tile_batch is None:
        tile_batch = _default_tile_batch()

    # Fold eval-mode BN into the linears (wrapper-side algebra, tiny).
    folded = [_fold_bn(params[i][0], params[i][1], *bn[i]) for i in range(4)]
    w5, b5 = params[4]                                  # (16, 2), (2,)

    # Batch tile: multiple of 128 (lane-dense (2, tb) output block), capped at
    # ~N/2 so there are >= 2 grid steps (v7x dual TensorCore), capped by
    # tile_batch.  grid = cdiv(N, tb); the tail block is handled by Pallas'
    # padded reads / masked writes -- no materialized zero-pad of x.
    tb = max(128, min(tile_batch, _round_up(pl.cdiv(n, 2), 128)))
    grid = (pl.cdiv(n, tb),)

    operands = [x.astype(compute_dtype)]
    in_specs = [pl.BlockSpec((tb, fin), lambda i: (i, 0))]
    for w, b in folded:
        operands += [w.astype(compute_dtype),
                     b.reshape(1, -1).astype(jnp.float32)]
        in_specs += [pl.BlockSpec(w.shape, lambda i: (0, 0)),
                     pl.BlockSpec((1, w.shape[1]), lambda i: (0, 0))]
    # Final linear in (out, in) layout, zero-padded to 8 rows for a standard
    # MXU lhs tile; bias as (8, 1) for a lane-broadcast add.
    w5t = jnp.zeros((8, 16), compute_dtype).at[:2].set(w5.T.astype(compute_dtype))
    b5p = jnp.zeros((8, 1), jnp.float32).at[:2, 0].set(b5)
    operands += [w5t, b5p]
    in_specs += [pl.BlockSpec((8, 16), lambda i: (0, 0)),
                 pl.BlockSpec((8, 1), lambda i: (0, 0))]

    # ~6 KiB/row covers the bf16 x double-buffers, f32 intermediates and the
    # (2, tb) output with margin; keep >= 32 MiB so v5e's 16 MiB scoped default
    # is always lifted, and cap well below v7x's 64 MiB physical VMEM.
    vmem_limit = int(min(56 * 2**20, max(32 * 2**20, tb * 6 * 1024)))

    out = pl.pallas_call(
        _mlp_kernel,
        out_shape=jax.ShapeDtypeStruct((2, n), jnp.float32),
        grid_spec=pltpu.PrefetchScalarGridSpec(
            num_scalar_prefetch=0,
            grid=grid,
            in_specs=in_specs,
            out_specs=pl.BlockSpec((2, tb), lambda i: (0, i)),
        ),
        compiler_params=pltpu.CompilerParams(
            dimension_semantics=("parallel",),
            vmem_limit_bytes=vmem_limit),
    )(*operands)

    # Restore the module's (N, 2) layout (tiny XLA transpose over 8N bytes).
    return out.T


def _reference_forward(x, params, bn):
    """Plain-JAX reference (eval-mode PyTorch semantics, unfolded BN)."""
    h = x
    for li in range(4):
        w, b = params[li]
        g, be, m, v = bn[li]
        h = h @ w + b
        h = (h - m) / jnp.sqrt(v + EPS) * g + be
        h = jnp.maximum(h, 0.0)
    w5, b5 = params[4]
    return h @ w5 + b5


if __name__ == "__main__":
    key = jax.random.PRNGKey(0)
    pkey, xkey = jax.random.split(key)

    params, bn = init_params(pkey)
    # Small, awkward batch: exercises a 2-step grid and the masked tail block.
    x = jax.random.normal(xkey, (200, 11), jnp.float32)
    y_ref = _reference_forward(x, params, bn)

    # f32 compute path (tight check, same tolerance class as before).
    y32 = jax.block_until_ready(
        anomaly_detector_forward(x, params, bn, compute_dtype=jnp.float32))
    assert y32.shape == (200, 2)
    assert jnp.allclose(y32, y_ref, atol=2e-3, rtol=2e-3), "f32 mismatch vs reference"

    # Default bf16 compute path (MXU-native operands, looser tolerance).
    y16 = jax.block_until_ready(anomaly_detector_forward(x, params, bn))
    assert y16.shape == (200, 2)
    assert jnp.allclose(y16, y_ref, atol=2e-2, rtol=2e-2), "bf16 mismatch vs reference"

    print("KERNEL_OK")
</pallas_src>

<mosaic_0001>
module attributes {stable_mosaic.version = 11 : i64} {
  func.func @_mlp_kernel(%arg0: i32, %arg1: memref<128x11xf32, #tpu.memory_space<vmem>>, %arg2: memref<11x128xf32, #tpu.memory_space<vmem>>, %arg3: memref<1x128xf32, #tpu.memory_space<vmem>>, %arg4: memref<128x64xf32, #tpu.memory_space<vmem>>, %arg5: memref<1x64xf32, #tpu.memory_space<vmem>>, %arg6: memref<64x32xf32, #tpu.memory_space<vmem>>, %arg7: memref<1x32xf32, #tpu.memory_space<vmem>>, %arg8: memref<32x16xf32, #tpu.memory_space<vmem>>, %arg9: memref<1x16xf32, #tpu.memory_space<vmem>>, %arg10: memref<8x16xf32, #tpu.memory_space<vmem>>, %arg11: memref<8x1xf32, #tpu.memory_space<vmem>>, %arg12: memref<2x128xf32, #tpu.memory_space<vmem>>) attributes {dimension_semantics = [#tpu.dimension_semantics<parallel>], iteration_bounds = array<i64: 2>, scalar_prefetch = 0 : i64, scratch_operands = 0 : i64, tpu.core_type = #tpu.core_type<tc>, window_params = [{transform_indices = @transform_0, window_bounds = array<i64: 128, 11>}, {pipeline_mode = #tpu.pipeline_mode<synchronous>, transform_indices = @transform_1, window_bounds = array<i64: 11, 128>}, {pipeline_mode = #tpu.pipeline_mode<synchronous>, transform_indices = @transform_2, window_bounds = array<i64: 1, 128>}, {pipeline_mode = #tpu.pipeline_mode<synchronous>, transform_indices = @transform_3, window_bounds = array<i64: 128, 64>}, {pipeline_mode = #tpu.pipeline_mode<synchronous>, transform_indices = @transform_4, window_bounds = array<i64: 1, 64>}, {pipeline_mode = #tpu.pipeline_mode<synchronous>, transform_indices = @transform_5, window_bounds = array<i64: 64, 32>}, {pipeline_mode = #tpu.pipeline_mode<synchronous>, transform_indices = @transform_6, window_bounds = array<i64: 1, 32>}, {pipeline_mode = #tpu.pipeline_mode<synchronous>, transform_indices = @transform_7, window_bounds = array<i64: 32, 16>}, {pipeline_mode = #tpu.pipeline_mode<synchronous>, transform_indices = @transform_8, window_bounds = array<i64: 1, 16>}, {pipeline_mode = #tpu.pipeline_mode<synchronous>, transform_indices = @transform_9, window_bounds = array<i64: 8, 16>}, {pipeline_mode = #tpu.pipeline_mode<synchronous>, transform_indices = @transform_10, window_bounds = array<i64: 8, 1>}, {transform_indices = @transform_11, window_bounds = array<i64: 2, 128>}]} {
    %c0 = arith.constant 0 : index
    %c0_0 = arith.constant 0 : index
    %0 = vector.load %arg1[%c0, %c0_0] : memref<128x11xf32, #tpu.memory_space<vmem>>, vector<128x11xf32>
    %c0_1 = arith.constant 0 : index
    %c0_2 = arith.constant 0 : index
    %1 = vector.load %arg2[%c0_1, %c0_2] : memref<11x128xf32, #tpu.memory_space<vmem>>, vector<11x128xf32>
    %cst = arith.constant dense<0.000000e+00> : vector<128x128xf32>
    %2 = tpu.matmul %0, %1, %cst {dimension_numbers = #tpu.dot_dimension_numbers<[1], [0], [0], [1], [0, 0, 1, 1], [], []>} : vector<128x11xf32>, vector<11x128xf32>, vector<128x128xf32> -> vector<128x128xf32>
    %c0_3 = arith.constant 0 : index
    %c0_4 = arith.constant 0 : index
    %3 = vector.load %arg3[%c0_3, %c0_4] : memref<1x128xf32, #tpu.memory_space<vmem>>, vector<1x128xf32>
    %4 = vector.broadcast %3 : vector<1x128xf32> to vector<128x128xf32>
    %5 = arith.addf %2, %4 : vector<128x128xf32>
    %cst_5 = arith.constant 0.000000e+00 : f32
    %6 = vector.broadcast %cst_5 : f32 to vector<128x128xf32>
    %7 = arith.maximumf %5, %6 : vector<128x128xf32>
    %c0_6 = arith.constant 0 : index
    %c0_7 = arith.constant 0 : index
    %8 = vector.load %arg4[%c0_6, %c0_7] : memref<128x64xf32, #tpu.memory_space<vmem>>, vector<128x64xf32>
    %cst_8 = arith.constant dense<0.000000e+00> : vector<128x64xf32>
    %9 = tpu.matmul %7, %8, %cst_8 {dimension_numbers = #tpu.dot_dimension_numbers<[1], [0], [0], [1], [0, 0, 1, 1], [], []>} : vector<128x128xf32>, vector<128x64xf32>, vector<128x64xf32> -> vector<128x64xf32>
    %c0_9 = arith.constant 0 : index
    %c0_10 = arith.constant 0 : index
    %10 = vector.load %arg5[%c0_9, %c0_10] : memref<1x64xf32, #tpu.memory_space<vmem>>, vector<1x64xf32>
    %11 = vector.broadcast %10 : vector<1x64xf32> to vector<128x64xf32>
    %12 = arith.addf %9, %11 : vector<128x64xf32>
    %cst_11 = arith.constant 0.000000e+00 : f32
    %13 = vector.broadcast %cst_11 : f32 to vector<128x64xf32>
    %14 = arith.maximumf %12, %13 : vector<128x64xf32>
    %c0_12 = arith.constant 0 : index
    %c0_13 = arith.constant 0 : index
    %15 = vector.load %arg6[%c0_12, %c0_13] : memref<64x32xf32, #tpu.memory_space<vmem>>, vector<64x32xf32>
    %cst_14 = arith.constant dense<0.000000e+00> : vector<128x32xf32>
    %16 = tpu.matmul %14, %15, %cst_14 {dimension_numbers = #tpu.dot_dimension_numbers<[1], [0], [0], [1], [0, 0, 1, 1], [], []>} : vector<128x64xf32>, vector<64x32xf32>, vector<128x32xf32> -> vector<128x32xf32>
    %c0_15 = arith.constant 0 : index
    %c0_16 = arith.constant 0 : index
    %17 = vector.load %arg7[%c0_15, %c0_16] : memref<1x32xf32, #tpu.memory_space<vmem>>, vector<1x32xf32>
    %18 = vector.broadcast %17 : vector<1x32xf32> to vector<128x32xf32>
    %19 = arith.addf %16, %18 : vector<128x32xf32>
    %cst_17 = arith.constant 0.000000e+00 : f32
    %20 = vector.broadcast %cst_17 : f32 to vector<128x32xf32>
    %21 = arith.maximumf %19, %20 : vector<128x32xf32>
    %c0_18 = arith.constant 0 : index
    %c0_19 = arith.constant 0 : index
    %22 = vector.load %arg8[%c0_18, %c0_19] : memref<32x16xf32, #tpu.memory_space<vmem>>, vector<32x16xf32>
    %cst_20 = arith.constant dense<0.000000e+00> : vector<128x16xf32>
    %23 = tpu.matmul %21, %22, %cst_20 {dimension_numbers = #tpu.dot_dimension_numbers<[1], [0], [0], [1], [0, 0, 1, 1], [], []>} : vector<128x32xf32>, vector<32x16xf32>, vector<128x16xf32> -> vector<128x16xf32>
    %c0_21 = arith.constant 0 : index
    %c0_22 = arith.constant 0 : index
    %24 = vector.load %arg9[%c0_21, %c0_22] : memref<1x16xf32, #tpu.memory_space<vmem>>, vector<1x16xf32>
    %25 = vector.broadcast %24 : vector<1x16xf32> to vector<128x16xf32>
    %26 = arith.addf %23, %25 : vector<128x16xf32>
    %cst_23 = arith.constant 0.000000e+00 : f32
    %27 = vector.broadcast %cst_23 : f32 to vector<128x16xf32>
    %28 = arith.maximumf %26, %27 : vector<128x16xf32>
    %c0_24 = arith.constant 0 : index
    %c0_25 = arith.constant 0 : index
    %29 = vector.load %arg10[%c0_24, %c0_25] : memref<8x16xf32, #tpu.memory_space<vmem>>, vector<8x16xf32>
    %cst_26 = arith.constant dense<0.000000e+00> : vector<8x128xf32>
    %30 = tpu.matmul %29, %28, %cst_26 {dimension_numbers = #tpu.dot_dimension_numbers<[1], [1], [0], [0], [0, 0, 1, 0], [], []>} : vector<8x16xf32>, vector<128x16xf32>, vector<8x128xf32> -> vector<8x128xf32>
    %c0_27 = arith.constant 0 : index
    %c0_28 = arith.constant 0 : index
    %31 = vector.load %arg11[%c0_27, %c0_28] : memref<8x1xf32, #tpu.memory_space<vmem>>, vector<8x1xf32>
    %32 = vector.broadcast %31 : vector<8x1xf32> to vector<8x128xf32>
    %33 = arith.addf %30, %32 : vector<8x128xf32>
    %34 = vector.extract_strided_slice %33 {offsets = [0, 0], sizes = [2, 128], strides = [1, 1]} : vector<8x128xf32> to vector<2x128xf32>
    %c0_29 = arith.constant 0 : index
    %c0_30 = arith.constant 0 : index
    %35 = vector.load %arg12[%c0_29, %c0_30] : memref<2x128xf32, #tpu.memory_space<vmem>>, vector<2x128xf32>
    tpu.vector_store %arg12[%c0_29, %c0_30], %34 {strides = array<i32>} : memref<2x128xf32, #tpu.memory_space<vmem>>, vector<2x128xf32>,
    return
  }
  func.func @transform_0(%arg0: i32) -> (i32, i32) {
    %c0_i32 = arith.constant 0 : i32
    %c0_i32_0 = arith.constant 0 : i32
    return %arg0, %c0_i32 : i32, i32
  }
  func.func @transform_1(%arg0: i32) -> (i32, i32) {
    %c0_i32 = arith.constant 0 : i32
    %c0_i32_0 = arith.constant 0 : i32
    %c0_i32_1 = arith.constant 0 : i32
    return %c0_i32, %c0_i32_0 : i32, i32
  }
  func.func @transform_2(%arg0: i32) -> (i32, i32) {
    %c0_i32 = arith.constant 0 : i32
    %c0_i32_0 = arith.constant 0 : i32
    %c0_i32_1 = arith.constant 0 : i32
    return %c0_i32, %c0_i32_0 : i32, i32
  }
  func.func @transform_3(%arg0: i32) -> (i32, i32) {
    %c0_i32 = arith.constant 0 : i32
    %c0_i32_0 = arith.constant 0 : i32
    %c0_i32_1 = arith.constant 0 : i32
    return %c0_i32, %c0_i32_0 : i32, i32
  }
  func.func @transform_4(%arg0: i32) -> (i32, i32) {
    %c0_i32 = arith.constant 0 : i32
    %c0_i32_0 = arith.constant 0 : i32
    %c0_i32_1 = arith.constant 0 : i32
    return %c0_i32, %c0_i32_0 : i32, i32
  }
  func.func @transform_5(%arg0: i32) -> (i32, i32) {
    %c0_i32 = arith.constant 0 : i32
    %c0_i32_0 = arith.constant 0 : i32
    %c0_i32_1 = arith.constant 0 : i32
    return %c0_i32, %c0_i32_0 : i32, i32
  }
  func.func @transform_6(%arg0: i32) -> (i32, i32) {
    %c0_i32 = arith.constant 0 : i32
    %c0_i32_0 = arith.constant 0 : i32
    %c0_i32_1 = arith.constant 0 : i32
    return %c0_i32, %c0_i32_0 : i32, i32
  }
  func.func @transform_7(%arg0: i32) -> (i32, i32) {
    %c0_i32 = arith.constant 0 : i32
    %c0_i32_0 = arith.constant 0 : i32
    %c0_i32_1 = arith.constant 0 : i32
    return %c0_i32, %c0_i32_0 : i32, i32
  }
  func.func @transform_8(%arg0: i32) -> (i32, i32) {
    %c0_i32 = arith.constant 0 : i32
    %c0_i32_0 = arith.constant 0 : i32
    %c0_i32_1 = arith.constant 0 : i32
    return %c0_i32, %c0_i32_0 : i32, i32
  }
  func.func @transform_9(%arg0: i32) -> (i32, i32) {
    %c0_i32 = arith.constant 0 : i32
    %c0_i32_0 = arith.constant 0 : i32
    %c0_i32_1 = arith.constant 0 : i32
    return %c0_i32, %c0_i32_0 : i32, i32
  }
  func.func @transform_10(%arg0: i32) -> (i32, i32) {
    %c0_i32 = arith.constant 0 : i32
    %c0_i32_0 = arith.constant 0 : i32
    %c0_i32_1 = arith.constant 0 : i32
    return %c0_i32, %c0_i32_0 : i32, i32
  }
  func.func @transform_11(%arg0: i32) -> (i32, i32) {
    %c0_i32 = arith.constant 0 : i32
    %c0_i32_0 = arith.constant 0 : i32
    return %c0_i32, %arg0 : i32, i32
  }
}

</mosaic_0001>

<llo_original>
// kernel: tpu_custom_call.1
$region0: #{tpu_custom_call.1}
  #allocation0 [shape = 'u32[]', space=smem, size = 0x4, offset = 0x4, fixed_abs, tag = 'smem constant byte address 0x4 - core index']
  #allocation1 [shape = 'u32[144,128]{1,0:T(1,128)}', space=vmem, size = 0x12000, scoped, tag = 'internal scratch']
  %s0 = inlined_call_operand.vmem [shape: f32[200,11], index: 0, kind: input, shape index: {}]
  %s1 = inlined_call_operand.vmem [shape: f32[11,128], index: 1, kind: input, shape index: {}]
  %s2 = inlined_call_operand.vmem [shape: f32[1,128], index: 2, kind: input, shape index: {}]
  %s3 = inlined_call_operand.vmem [shape: f32[128,64], index: 3, kind: input, shape index: {}]
  %s4 = inlined_call_operand.vmem [shape: f32[1,64], index: 4, kind: input, shape index: {}]
  %s5 = inlined_call_operand.vmem [shape: f32[64,32], index: 5, kind: input, shape index: {}]
  %s6 = inlined_call_operand.vmem [shape: f32[1,32], index: 6, kind: input, shape index: {}]
  %s7 = inlined_call_operand.vmem [shape: f32[32,16], index: 7, kind: input, shape index: {}]
  %s8 = inlined_call_operand.vmem [shape: f32[1,16], index: 8, kind: input, shape index: {}]
  %s9 = inlined_call_operand.vmem [shape: f32[8,16], index: 9, kind: input, shape index: {}]
  %s10 = inlined_call_operand.vmem [shape: f32[8,1], index: 10, kind: input, shape index: {}]
  %s11 = inlined_call_operand.hbm [shape: f32[2,200], index: 11, kind: output, shape index: {}]
  %s12 = sld [smem:[#allocation0]]
  $region77: #{tpu_custom_call.1} parent=0
    _
  %s14 = ssub.s32 1, %s12
  %s15 = scalar_select 0, %s14, %s12
  $region1: #{tpu_custom_call.1} parent=0
    #allocation2 [shape = 'u8[2048]{0}', space=vmem, size = 0x800, scoped, tag = 'output window, operand 0']
    #allocation3 [shape = 's32[2]{0}', space=sflag, size = 0x8, scoped, tag = 'scoped memory for tpu_custom_call.1']
    %16 = vsyncpa [#allocation3], 0
    %s17 = scalar_lea.sflag [#allocation3], 1
    %18 = vsyncpa %s17, 0
    loop: start=0, step=1, limit=4
    $region2: #{tpu_custom_call.1} parent=1 // loop_pre_header
      _
    $region3: #{tpu_custom_call.1} parent=1 // loop_header
      %s20 = sphi 0, %s24
      %p21 = scmp.ge.s32.totalorder %s20, 4
      %s30 = sphi 0, %s32
      %s33 = sphi 0, %s30
      %s34 = sphi 0, %s33
      %s50 = sphi 0, %s34
      %s54 = sphi 0, %s54
      %s56 = sphi 0, %s54
      %s57 = sphi 0, %s56
      %s71 = sphi 0, %s57
      %s75 = sphi 0, %s75
      %s77 = sphi 0, %s75
      %s78 = sphi 0, %s77
      %s92 = sphi 0, %s78
      %s96 = sphi 0, %s96
      %s98 = sphi 0, %s96
      %s99 = sphi 0, %s98
      %s113 = sphi 0, %s99
      %s117 = sphi 0, %s117
      %s119 = sphi 0, %s117
      %s120 = sphi 0, %s119
      %s134 = sphi 0, %s120
      %s138 = sphi 0, %s138
      %s140 = sphi 0, %s138
      %s141 = sphi 0, %s140
      %s155 = sphi 0, %s141
      %s159 = sphi 0, %s159
      %s161 = sphi 0, %s159
      %s162 = sphi 0, %s161
      %s176 = sphi 0, %s162
      %s180 = sphi 0, %s180
      %s182 = sphi 0, %s180
      %s183 = sphi 0, %s182
      %s197 = sphi 0, %s183
      %s201 = sphi 0, %s201
      %s203 = sphi 0, %s201
      %s204 = sphi 0, %s203
      %s218 = sphi 0, %s204
      %s222 = sphi 0, %s222
      %s224 = sphi 0, %s222
      %s225 = sphi 0, %s224
      %s239 = sphi 0, %s225
      %s243 = sphi 0, %s243
      %s245 = sphi 0, %s243
      %s246 = sphi 0, %s245
      %s260 = sphi 0, %s246
      %s266 = sphi 0, %s268
      %s269 = sphi 0, %s266
      %s270 = sphi 0, %s269
      %s286 = sphi 0, %s270
    $region4: #{tpu_custom_call.1} parent=1 // loop_header_branch
      %23 = sbr.rel (%p21) target = $region8
    $region5: #{tpu_custom_call.1} parent=1 // loop_body
      %s25 = ssub.s32 %s20, 1
      %s26 = ssub.s32 %s20, 2
      %s27 = sadd.s32 %s20, 1
      %s28 = ssub.s32 %s20, %s27
      %p29 = scmp.eq.s32.totalorder %s28, 0
      %s31 = sadd.s32 %s30, 1
      %s32 = scalar_select %p29, %s30, %s31
      %p35 = pneg %p29
      %p36 = scmp.eq.s32.totalorder %s20, 1
      %p37 = por %p35, %p36
      %p38 = scmp.ne.s32.totalorder %s30, %s33
      %p39 = scmp.eq.s32.totalorder %s20, 0
      %p40 = por %p38, %p39
      %p41 = scmp.ne.s32.totalorder %s30, %s33
      %p42 = scmp.eq.s32.totalorder %s25, 1
      %p43 = por %p41, %p42
      %p44 = scmp.ne.s32.totalorder %s33, %s34
      %p45 = scmp.eq.s32.totalorder %s25, 0
      %p46 = por %p44, %p45
      %p47 = scmp.ne.s32.totalorder %s33, %s34
      %p48 = scmp.eq.s32.totalorder %s26, 1
      %p49 = por %p47, %p48
      %p51 = scmp.ne.s32.totalorder %s34, %s50
      %p52 = scmp.eq.s32.totalorder %s26, 0
      %p53 = por %p51, %p52
      %s55 = sadd.s32 %s54, 1
      %p58 = scmp.eq.s32.totalorder %s20, 1
      %p59 = scmp.ne.s32.totalorder %s54, %s56
      %p60 = scmp.eq.s32.totalorder %s20, 0
      %p61 = por %p59, %p60
      %p62 = scmp.ne.s32.totalorder %s54, %s56
      %p63 = scmp.eq.s32.totalorder %s25, 1
      %p64 = por %p62, %p63
      %p65 = scmp.ne.s32.totalorder %s56, %s57
      %p66 = scmp.eq.s32.totalorder %s25, 0
      %p67 = por %p65, %p66
      %p68 = scmp.ne.s32.totalorder %s56, %s57
      %p69 = scmp.eq.s32.totalorder %s26, 1
      %p70 = por %p68, %p69
      %p72 = scmp.ne.s32.totalorder %s57, %s71
      %p73 = scmp.eq.s32.totalorder %s26, 0
      %p74 = por %p72, %p73
      %s76 = sadd.s32 %s75, 1
      %p79 = scmp.eq.s32.totalorder %s20, 1
      %p80 = scmp.ne.s32.totalorder %s75, %s77
      %p81 = scmp.eq.s32.totalorder %s20, 0
      %p82 = por %p80, %p81
      %p83 = scmp.ne.s32.totalorder %s75, %s77
      %p84 = scmp.eq.s32.totalorder %s25, 1
      %p85 = por %p83, %p84
      %p86 = scmp.ne.s32.totalorder %s77, %s78
      %p87 = scmp.eq.s32.totalorder %s25, 0
      %p88 = por %p86, %p87
      %p89 = scmp.ne.s32.totalorder %s77, %s78
      %p90 = scmp.eq.s32.totalorder %s26, 1
      %p91 = por %p89, %p90
      %p93 = scmp.ne.s32.totalorder %s78, %s92
      %p94 = scmp.eq.s32.totalorder %s26, 0
      %p95 = por %p93, %p94
      %s97 = sadd.s32 %s96, 1
      %p100 = scmp.eq.s32.totalorder %s20, 1
      %p101 = scmp.ne.s32.totalorder %s96, %s98
      %p102 = scmp.eq.s32.totalorder %s20, 0
      %p103 = por %p101, %p102
      %p104 = scmp.ne.s32.totalorder %s96, %s98
      %p105 = scmp.eq.s32.totalorder %s25, 1
      %p106 = por %p104, %p105
      %p107 = scmp.ne.s32.totalorder %s98, %s99
      %p108 = scmp.eq.s32.totalorder %s25, 0
      %p109 = por %p107, %p108
      %p110 = scmp.ne.s32.totalorder %s98, %s99
      %p111 = scmp.eq.s32.totalorder %s26, 1
      %p112 = por %p110, %p111
      %p114 = scmp.ne.s32.totalorder %s99, %s113
      %p115 = scmp.eq.s32.totalorder %s26, 0
      %p116 = por %p114, %p115
      %s118 = sadd.s32 %s117, 1
      %p121 = scmp.eq.s32.totalorder %s20, 1
      %p122 = scmp.ne.s32.totalorder %s117, %s119
      %p123 = scmp.eq.s32.totalorder %s20, 0
      %p124 = por %p122, %p123
      %p125 = scmp.ne.s32.totalorder %s117, %s119
      %p126 = scmp.eq.s32.totalorder %s25, 1
      %p127 = por %p125, %p126
      %p128 = scmp.ne.s32.totalorder %s119, %s120
      %p129 = scmp.eq.s32.totalorder %s25, 0
      %p130 = por %p128, %p129
      %p131 = scmp.ne.s32.totalorder %s119, %s120
      %p132 = scmp.eq.s32.totalorder %s26, 1
      %p133 = por %p131, %p132
      %p135 = scmp.ne.s32.totalorder %s120, %s134
      %p136 = scmp.eq.s32.totalorder %s26, 0
      %p137 = por %p135, %p136
      %s139 = sadd.s32 %s138, 1
      %p142 = scmp.eq.s32.totalorder %s20, 1
      %p143 = scmp.ne.s32.totalorder %s138, %s140
      %p144 = scmp.eq.s32.totalorder %s20, 0
      %p145 = por %p143, %p144
      %p146 = scmp.ne.s32.totalorder %s138, %s140
      %p147 = scmp.eq.s32.totalorder %s25, 1
      %p148 = por %p146, %p147
      %p149 = scmp.ne.s32.totalorder %s140, %s141
      %p150 = scmp.eq.s32.totalorder %s25, 0
      %p151 = por %p149, %p150
      %p152 = scmp.ne.s32.totalorder %s140, %s141
      %p153 = scmp.eq.s32.totalorder %s26, 1
      %p154 = por %p152, %p153
      %p156 = scmp.ne.s32.totalorder %s141, %s155
      %p157 = scmp.eq.s32.totalorder %s26, 0
      %p158 = por %p156, %p157
      %s160 = sadd.s32 %s159, 1
      %p163 = scmp.eq.s32.totalorder %s20, 1
      %p164 = scmp.ne.s32.totalorder %s159, %s161
      %p165 = scmp.eq.s32.totalorder %s20, 0
      %p166 = por %p164, %p165
      %p167 = scmp.ne.s32.totalorder %s159, %s161
      %p168 = scmp.eq.s32.totalorder %s25, 1
      %p169 = por %p167, %p168
      %p170 = scmp.ne.s32.totalorder %s161, %s162
      %p171 = scmp.eq.s32.totalorder %s25, 0
      %p172 = por %p170, %p171
      %p173 = scmp.ne.s32.totalorder %s161, %s162
      %p174 = scmp.eq.s32.totalorder %s26, 1
      %p175 = por %p173, %p174
      %p177 = scmp.ne.s32.totalorder %s162, %s176
      %p178 = scmp.eq.s32.totalorder %s26, 0
      %p179 = por %p177, %p178
      %s181 = sadd.s32 %s180, 1
      %p184 = scmp.eq.s32.totalorder %s20, 1
      %p185 = scmp.ne.s32.totalorder %s180, %s182
      %p186 = scmp.eq.s32.totalorder %s20, 0
      %p187 = por %p185, %p186
      %p188 = scmp.ne.s32.totalorder %s180, %s182
      %p189 = scmp.eq.s32.totalorder %s25, 1
      %p190 = por %p188, %p189
      %p191 = scmp.ne.s32.totalorder %s182, %s183
      %p192 = scmp.eq.s32.totalorder %s25, 0
      %p193 = por %p191, %p192
      %p194 = scmp.ne.s32.totalorder %s182, %s183
      %p195 = scmp.eq.s32.totalorder %s26, 1
      %p196 = por %p194, %p195
      %p198 = scmp.ne.s32.totalorder %s183, %s197
      %p199 = scmp.eq.s32.totalorder %s26, 0
      %p200 = por %p198, %p199
      %s202 = sadd.s32 %s201, 1
      %p205 = scmp.eq.s32.totalorder %s20, 1
      %p206 = scmp.ne.s32.totalorder %s201, %s203
      %p207 = scmp.eq.s32.totalorder %s20, 0
      %p208 = por %p206, %p207
      %p209 = scmp.ne.s32.totalorder %s201, %s203
      %p210 = scmp.eq.s32.totalorder %s25, 1
      %p211 = por %p209, %p210
      %p212 = scmp.ne.s32.totalorder %s203, %s204
      %p213 = scmp.eq.s32.totalorder %s25, 0
      %p214 = por %p212, %p213
      %p215 = scmp.ne.s32.totalorder %s203, %s204
      %p216 = scmp.eq.s32.totalorder %s26, 1
      %p217 = por %p215, %p216
      %p219 = scmp.ne.s32.totalorder %s204, %s218
      %p220 = scmp.eq.s32.totalorder %s26, 0
      %p221 = por %p219, %p220
      %s223 = sadd.s32 %s222, 1
      %p226 = scmp.eq.s32.totalorder %s20, 1
      %p227 = scmp.ne.s32.totalorder %s222, %s224
      %p228 = scmp.eq.s32.totalorder %s20, 0
      %p229 = por %p227, %p228
      %p230 = scmp.ne.s32.totalorder %s222, %s224
      %p231 = scmp.eq.s32.totalorder %s25, 1
      %p232 = por %p230, %p231
      %p233 = scmp.ne.s32.totalorder %s224, %s225
      %p234 = scmp.eq.s32.totalorder %s25, 0
      %p235 = por %p233, %p234
      %p236 = scmp.ne.s32.totalorder %s224, %s225
      %p237 = scmp.eq.s32.totalorder %s26, 1
      %p238 = por %p236, %p237
      %p240 = scmp.ne.s32.totalorder %s225, %s239
      %p241 = scmp.eq.s32.totalorder %s26, 0
      %p242 = por %p240, %p241
      %s244 = sadd.s32 %s243, 1
      %p247 = scmp.eq.s32.totalorder %s20, 1
      %p248 = scmp.ne.s32.totalorder %s243, %s245
      %p249 = scmp.eq.s32.totalorder %s20, 0
      %p250 = por %p248, %p249
      %p251 = scmp.ne.s32.totalorder %s243, %s245
      %p252 = scmp.eq.s32.totalorder %s25, 1
      %p253 = por %p251, %p252
      %p254 = scmp.ne.s32.totalorder %s245, %s246
      %p255 = scmp.eq.s32.totalorder %s25, 0
      %p256 = por %p254, %p255
      %p257 = scmp.ne.s32.totalorder %s245, %s246
      %p258 = scmp.eq.s32.totalorder %s26, 1
      %p259 = por %p257, %p258
      %p261 = scmp.ne.s32.totalorder %s246, %s260
      %p262 = scmp.eq.s32.totalorder %s26, 0
      %p263 = por %p261, %p262
      %s264 = ssub.s32 %s20, %s27
      %p265 = scmp.eq.s32.totalorder %s264, 0
      %s267 = sadd.s32 %s266, 1
      %s268 = scalar_select %p265, %s266, %s267
      %p271 = pneg %p265
      %p272 = scmp.eq.s32.totalorder %s20, 1
      %p273 = por %p271, %p272
      %p274 = scmp.ne.s32.totalorder %s266, %s269
      %p275 = scmp.eq.s32.totalorder %s20, 0
      %p276 = por %p274, %p275
      %p277 = scmp.ne.s32.totalorder %s266, %s269
      %p278 = scmp.eq.s32.totalorder %s25, 1
      %p279 = por %p277, %p278
      %p280 = scmp.ne.s32.totalorder %s269, %s270
      %p281 = scmp.eq.s32.totalorder %s25, 0
      %p282 = por %p280, %p281
      %p283 = scmp.ne.s32.totalorder %s269, %s270
      %p284 = scmp.eq.s32.totalorder %s26, 1
      %p285 = por %p283, %p284
      %p287 = scmp.ne.s32.totalorder %s270, %s286
      %p288 = scmp.eq.s32.totalorder %s26, 0
      %p289 = por %p287, %p288
      %p290 = scmp.le.s32.totalorder 1, %s20
      %p291 = scmp.lt.s32.totalorder %s20, 3
      %p292 = pnand %p290, %p291
      %p293 = pneg %p292
      // Predicated region
      $region9: #{tpu_custom_call.1} parent=5 // pred_check
        _
      $region10: #{tpu_custom_call.1} parent=5 // pred_check_branch
        %295 = sbr.rel (%p292) target = $region12
      $region11: #{tpu_custom_call.1} parent=5 // pred_region
        %s296 = ssub.s32 %s20, 1
        // Predicated region
        $region13: #{tpu_custom_call.1} parent=11 // pred_check
          %p297 = pneg %p67
        $region14: #{tpu_custom_call.1} parent=11 // pred_check_branch
          %299 = sbr.rel (%p297) target = $region16
        $region15: #{tpu_custom_call.1} parent=11 // pred_region
          _
        $region16: #{tpu_custom_call.1} parent=11 // pred_fallthru
          _
        // Predicated region
        $region17: #{tpu_custom_call.1} parent=11 // pred_check
          %p300 = pneg %p88
        $region18: #{tpu_custom_call.1} parent=11 // pred_check_branch
          %302 = sbr.rel (%p300) target = $region20
        $region19: #{tpu_custom_call.1} parent=11 // pred_region
          _
        $region20: #{tpu_custom_call.1} parent=11 // pred_fallthru
          _
        // Predicated region
        $region21: #{tpu_custom_call.1} parent=11 // pred_check
          %p303 = pneg %p109
        $region22: #{tpu_custom_call.1} parent=11 // pred_check_branch
          %305 = sbr.rel (%p303) target = $region24
        $region23: #{tpu_custom_call.1} parent=11 // pred_region
          _
        $region24: #{tpu_custom_call.1} parent=11 // pred_fallthru
          _
        // Predicated region
        $region25: #{tpu_custom_call.1} parent=11 // pred_check
          %p306 = pneg %p130
        $region26: #{tpu_custom_call.1} parent=11 // pred_check_branch
          %308 = sbr.rel (%p306) target = $region28
        $region27: #{tpu_custom_call.1} parent=11 // pred_region
          _
        $region28: #{tpu_custom_call.1} parent=11 // pred_fallthru
          _
        // Predicated region
        $region29: #{tpu_custom_call.1} parent=11 // pred_check
          %p309 = pneg %p151
        $region30: #{tpu_custom_call.1} parent=11 // pred_check_branch
          %311 = sbr.rel (%p309) target = $region32
        $region31: #{tpu_custom_call.1} parent=11 // pred_region
          _
        $region32: #{tpu_custom_call.1} parent=11 // pred_fallthru
          _
        // Predicated region
        $region33: #{tpu_custom_call.1} parent=11 // pred_check
          %p312 = pneg %p172
        $region34: #{tpu_custom_call.1} parent=11 // pred_check_branch
          %314 = sbr.rel (%p312) target = $region36
        $region35: #{tpu_custom_call.1} parent=11 // pred_region
          _
        $region36: #{tpu_custom_call.1} parent=11 // pred_fallthru
          _
        // Predicated region
        $region37: #{tpu_custom_call.1} parent=11 // pred_check
          %p315 = pneg %p193
        $region38: #{tpu_custom_call.1} parent=11 // pred_check_branch
          %317 = sbr.rel (%p315) target = $region40
        $region39: #{tpu_custom_call.1} parent=11 // pred_region
          _
        $region40: #{tpu_custom_call.1} parent=11 // pred_fallthru
          _
        // Predicated region
        $region41: #{tpu_custom_call.1} parent=11 // pred_check
          %p318 = pneg %p214
        $region42: #{tpu_custom_call.1} parent=11 // pred_check_branch
          %320 = sbr.rel (%p318) target = $region44
        $region43: #{tpu_custom_call.1} parent=11 // pred_region
          _
        $region44: #{tpu_custom_call.1} parent=11 // pred_fallthru
          _
        // Predicated region
        $region45: #{tpu_custom_call.1} parent=11 // pred_check
          %p321 = pneg %p235
        $region46: #{tpu_custom_call.1} parent=11 // pred_check_branch
          %323 = sbr.rel (%p321) target = $region48
        $region47: #{tpu_custom_call.1} parent=11 // pred_region
          _
        $region48: #{tpu_custom_call.1} parent=11 // pred_fallthru
          _
        // Predicated region
        $region49: #{tpu_custom_call.1} parent=11 // pred_check
          %p324 = pneg %p256
        $region50: #{tpu_custom_call.1} parent=11 // pred_check_branch
          %326 = sbr.rel (%p324) target = $region52
        $region51: #{tpu_custom_call.1} parent=11 // pred_region
          _
        $region52: #{tpu_custom_call.1} parent=11 // pred_fallthru
          _
      $region12: #{tpu_custom_call.1} parent=5 // pred_fallthru
        _
      %p327 = scmp.lt.s32.totalorder %s20, 2
      // Predicated region
      $region53: #{tpu_custom_call.1} parent=5 // pred_check
        %p328 = pneg %p327
      $region54: #{tpu_custom_call.1} parent=5 // pred_check_branch
        %330 = sbr.rel (%p328) target = $region56
      $region55: #{tpu_custom_call.1} parent=5 // pred_region
        // Predicated region
        $region57: #{tpu_custom_call.1} parent=55 // pred_check
          %p331 = pneg %p40
        $region58: #{tpu_custom_call.1} parent=55 // pred_check_branch
          %333 = sbr.rel (%p331) target = $region60
        $region59: #{tpu_custom_call.1} parent=55 // pred_region
          %s334 = smul.u32 16, %s20
          %s335 = ssub.s32 25, %s334
          %p336 = scmp.lt.s32.totalorder %s335, 16
          %s337 = scalar_select %p336, %s335, 16
          %s338 = smul.u32 128, %s337
          %p339 = scmp.lt.s32.totalorder %s334, 24
          %s340 = scalar_select %p339, %s334, 24
          %s341 = smul.addr %s340, 8
          %s342 = scalar_lea.vmem %s0, %s341
          %s343 = smul.u32 16, %s20
          %s344 = ssub.s32 25, %s343
          %p345 = scmp.lt.s32.totalorder %s344, 16
          %s346 = scalar_select %p345, %s344, 16
          %s347 = smul.u32 128, %s346
        $region60: #{tpu_custom_call.1} parent=55 // pred_fallthru
          _
      $region56: #{tpu_custom_call.1} parent=5 // pred_fallthru
        _
      %p348 = scmp.le.s32.totalorder 1, %s20
      %p349 = scmp.lt.s32.totalorder %s20, 3
      %p350 = pnand %p348, %p349
      %p351 = pneg %p350
      // Predicated region
      $region61: #{tpu_custom_call.1} parent=5 // pred_check
        _
      $region62: #{tpu_custom_call.1} parent=5 // pred_check_branch
        %353 = sbr.rel (%p350) target = $region64
      $region63: #{tpu_custom_call.1} parent=5 // pred_region
        %s354 = ssub.s32 %s20, 1
        %s355 = smul.u32 16, %s25
        %s356 = ssub.s32 25, %s355
        %p357 = scmp.lt.s32.totalorder %s356, 16
        %s358 = scalar_select %p357, %s356, 16
        %s359 = smul.u32 128, %s358
        %p360 = scmp.lt.s32.totalorder %s355, 24
        %s361 = scalar_select %p360, %s355, 24
        %s362 = smul.addr %s361, 8
        %s363 = scalar_lea.vmem %s0, %s362
        %p364 = pneg %p46
        %p365 = pneg %p43
        %p366 = pneg %p67
        %p367 = pneg %p64
        %p368 = pneg %p88
        %p369 = pneg %p85
        %p370 = pneg %p109
        %p371 = pneg %p106
        %p372 = pneg %p130
        %p373 = pneg %p127
        %p374 = pneg %p151
        %p375 = pneg %p148
        %p376 = pneg %p172
        %p377 = pneg %p169
        %p378 = pneg %p193
        %p379 = pneg %p190
        %p380 = pneg %p214
        %p381 = pneg %p211
        %p382 = pneg %p235
        %p383 = pneg %p232
        %p384 = pneg %p256
        %p385 = pneg %p253
        %p386 = pneg %p282
        %p387 = pneg %p279
        %s388 = sand.u32 %s269, 1
        %s389 = scalar_lea.sflag [#allocation3], %s388
        %s390 = sand.u32 %s269, 1
        %s391 = smul.addr %s390, 2
        %s392 = scalar_lea.vmem [#allocation2], %s391
        %s393 = smul.u32 16, %s25
        %s394 = ssub.s32 25, %s393
        %p395 = scmp.lt.s32.totalorder %s394, 16
        %s396 = scalar_select %p395, %s394, 16
        %s397 = smul.u32 128, %s396
        %p398 = scmp.lt.s32.totalorder %s393, 24
        %s399 = scalar_select %p398, %s393, 24
        %s400 = smul.addr %s399, 8
        %s401 = scalar_lea.vmem %s0, %s400
        %s402 = smul.u32 16, %s25
        %s403 = ssub.s32 25, %s402
        %p404 = scmp.lt.s32.totalorder %s403, 16
        %s405 = scalar_select %p404, %s403, 16
        %s406 = smul.u32 128, %s405
        %v407 = vld [vmem:[%s401] sm:$0xff]
        %v408 = vld [vmem:[%s401 + $0x8] sm:$0xff]
        %v409 = vld [vmem:[%s401 + $0x10] sm:$0xff]
        %v410 = vld [vmem:[%s401 + $0x18] sm:$0xff]
        %v411 = vld [vmem:[%s401 + $0x20] sm:$0xff]
        %v412 = vld [vmem:[%s401 + $0x28] sm:$0xff]
        %v413 = vld [vmem:[%s401 + $0x30] sm:$0xff]
        %v414 = vld [vmem:[%s401 + $0x38] sm:$0xff]
        %v415 = vld [vmem:[%s401 + $0x40] sm:$0xff]
        %v416 = vld [vmem:[%s401 + $0x48] sm:$0xff]
        %v417 = vld [vmem:[%s401 + $0x50] sm:$0xff]
        %v418 = vld [vmem:[%s401 + $0x58] sm:$0xff]
        %v419 = vld [vmem:[%s401 + $0x60] sm:$0xff]
        %v420 = vld [vmem:[%s401 + $0x68] sm:$0xff]
        %v421 = vld [vmem:[%s401 + $0x70] sm:$0xff]
        %v422 = vld [vmem:[%s401 + $0x78] sm:$0xff]
        %v423 = vld [vmem:[%s1] sm:$0xff]
        %v424 = vld [vmem:[%s1 + $0x8] sm:$0x7]
        %v425 = vld [vmem:[%s2] sm:$0x1]
        %v427 = vlaneseq
        %v428 = vshrl.u32 %v427, 7
        %v429 = vsub.s32 0, %v428
        %v430 = vrot.slane %v425, %v429
        %vm432 = vcmask 89088
        %v434 = vsel %vm432, %v407, 0
        %v437 = vsel %vm432, %v408, 0
        %v440 = vsel %vm432, %v409, 0
        %v443 = vsel %vm432, %v410, 0
        %v446 = vsel %vm432, %v411, 0
        %v449 = vsel %vm432, %v412, 0
        %v452 = vsel %vm432, %v413, 0
        %v455 = vsel %vm432, %v414, 0
        %v458 = vsel %vm432, %v415, 0
        %v461 = vsel %vm432, %v416, 0
        %v464 = vsel %vm432, %v417, 0
        %v467 = vsel %vm432, %v418, 0
        %v470 = vsel %vm432, %v419, 0
        %v473 = vsel %vm432, %v420, 0
        %v476 = vsel %vm432, %v421, 0
        %v479 = vsel %vm432, %v422, 0
        %vm481 = vcmask 1042432
        %v483 = vsel %vm481, %v424, 0
        %485 = vmatprep.subr.mxu0 0.0
        %486 = vmatpush1.msra.mxu0 0.0
        %487 = vmatprep.subr.mxu0 0.0
        %488 = vmatpush1.msra.mxu0 0.0
        %489 = vmatprep.subr.mxu0 0.0
        %490 = vmatpush1.msra.mxu0 0.0
        %491 = vmatprep.subr.mxu0 0.0
        %492 = vmatpush1.msra.mxu0 0.0
        %493 = vmatprep.subr.mxu0 0.0
        %494 = vmatpush1.msra.mxu0 0.0
        %495 = vmatprep.subr.mxu0 0.0
        %496 = vmatpush1.msra.mxu0 0.0
        %497 = vmatprep.subr.mxu0 0.0
        %498 = vmatpush1.msra.mxu0 0.0
        %499 = vmatprep.subr.mxu0 0.0
        %500 = vmatpush1.msra.mxu0 0.0
        %501 = vmatprep.subr.mxu0 0.0
        %502 = vmatpush1.msra.mxu0 0.0
        %503 = vmatprep.subr.mxu0 0.0
        %504 = vmatpush1.msra.mxu0 0.0
        %505 = vmatprep.subr.mxu0 0.0
        %506 = vmatpush1.msra.mxu0 0.0
        %507 = vmatprep.subr.mxu0 0.0
        %508 = vmatpush1.msra.mxu0 0.0
        %509 = vmatprep.subr.mxu0 0.0
        %510 = vmatpush1.msra.mxu0 0.0
        %511 = vmatprep.subr.mxu0 0.0
        %512 = vmatpush1.msra.mxu0 0.0
        %513 = vmatprep.subr.mxu0 0.0
        %514 = vmatpush1.msra.mxu0 %v483
        %515 = vmatprep.subr.mxu0 0.0
        %516 = vmatpush1.msra.mxu0 %v423
        %517 = vmatprep.subr.mxu0 0.0
        %518 = vmatpush2.msra.mxu0 0.0
        %519 = vmatprep.subr.mxu0 0.0
        %520 = vmatpush2.msra.mxu0 0.0
        %521 = vmatprep.subr.mxu0 0.0
        %522 = vmatpush2.msra.mxu0 0.0
        %523 = vmatprep.subr.mxu0 0.0
        %524 = vmatpush2.msra.mxu0 0.0
        %525 = vmatprep.subr.mxu0 0.0
        %526 = vmatpush2.msra.mxu0 0.0
        %527 = vmatprep.subr.mxu0 0.0
        %528 = vmatpush2.msra.mxu0 0.0
        %529 = vmatprep.subr.mxu0 0.0
        %530 = vmatpush2.msra.mxu0 0.0
        %531 = vmatprep.subr.mxu0 0.0
        %532 = vmatpush2.msra.mxu0 0.0
        %533 = vmatprep.subr.mxu0 0.0
        %534 = vmatpush2.msra.mxu0 0.0
        %535 = vmatprep.subr.mxu0 0.0
        %536 = vmatpush2.msra.mxu0 0.0
        %537 = vmatprep.subr.mxu0 0.0
        %538 = vmatpush2.msra.mxu0 0.0
        %539 = vmatprep.subr.mxu0 0.0
        %540 = vmatpush2.msra.mxu0 0.0
        %541 = vmatprep.subr.mxu0 0.0
        %542 = vmatpush2.msra.mxu0 0.0
        %543 = vmatprep.subr.mxu0 0.0
        %544 = vmatpush2.msra.mxu0 0.0
        %545 = vmatprep.subr.mxu0 0.0
        %546 = vmatpush2.msra.mxu0 0.0
        %547 = vmatprep.subr.mxu0 0.0
        %548 = vmatpush2.msra.mxu0 0.0
        %549 = vmatprep.mubr.f32.mxu0 0.0
        %550 = vmatmul.mubr.f32.gmra.mxu0 %v434
        %v551 = vpop.f32.mrf.mxu0
        %v552 = vadd.f32 %v430, %v551
        %v553 = vpop.f32.mrf.mxu0
        %554 = vmatprep.mubr.f32.mxu0 0.0
        %555 = vmatmul.mubr.f32.gmra.mxu0 %v437
        %v556 = vpop.f32.mrf.mxu0
        %v557 = vadd.f32 %v430, %v556
        %v558 = vpop.f32.mrf.mxu0
        %559 = vmatprep.mubr.f32.mxu0 0.0
        %560 = vmatmul.mubr.f32.gmra.mxu0 %v440
        %v561 = vpop.f32.mrf.mxu0
        %v562 = vadd.f32 %v430, %v561
        %v563 = vpop.f32.mrf.mxu0
        %564 = vmatprep.mubr.f32.mxu0 0.0
        %565 = vmatmul.mubr.f32.gmra.mxu0 %v443
        %v566 = vpop.f32.mrf.mxu0
        %v567 = vadd.f32 %v430, %v566
        %v568 = vpop.f32.mrf.mxu0
        %569 = vmatprep.mubr.f32.mxu0 0.0
        %570 = vmatmul.mubr.f32.gmra.mxu0 %v446
        %v571 = vpop.f32.mrf.mxu0
        %v572 = vadd.f32 %v430, %v571
        %v573 = vpop.f32.mrf.mxu0
        %574 = vmatprep.mubr.f32.mxu0 0.0
        %575 = vmatmul.mubr.f32.gmra.mxu0 %v449
        %v576 = vpop.f32.mrf.mxu0
        %v577 = vadd.f32 %v430, %v576
        %v578 = vpop.f32.mrf.mxu0
        %579 = vmatprep.mubr.f32.mxu0 0.0
        %580 = vmatmul.mubr.f32.gmra.mxu0 %v452
        %v581 = vpop.f32.mrf.mxu0
        %v582 = vadd.f32 %v430, %v581
        %v583 = vpop.f32.mrf.mxu0
        %584 = vmatprep.mubr.f32.mxu0 0.0
        %585 = vmatmul.mubr.f32.gmra.mxu0 %v455
        %v586 = vpop.f32.mrf.mxu0
        %v587 = vadd.f32 %v430, %v586
        %v588 = vpop.f32.mrf.mxu0
        %589 = vmatprep.mubr.f32.mxu0 0.0
        %590 = vmatmul.mubr.f32.gmra.mxu0 %v458
        %v591 = vpop.f32.mrf.mxu0
        %v592 = vadd.f32 %v430, %v591
        %v593 = vpop.f32.mrf.mxu0
        %594 = vmatprep.mubr.f32.mxu0 0.0
        %595 = vmatmul.mubr.f32.gmra.mxu0 %v461
        %v596 = vpop.f32.mrf.mxu0
        %v597 = vadd.f32 %v430, %v596
        %v598 = vpop.f32.mrf.mxu0
        %599 = vmatprep.mubr.f32.mxu0 0.0
        %600 = vmatmul.mubr.f32.gmra.mxu0 %v464
        %v601 = vpop.f32.mrf.mxu0
        %v602 = vadd.f32 %v430, %v601
        %v603 = vpop.f32.mrf.mxu0
        %604 = vmatprep.mubr.f32.mxu0 0.0
        %605 = vmatmul.mubr.f32.gmra.mxu0 %v467
        %v606 = vpop.f32.mrf.mxu0
        %v607 = vadd.f32 %v430, %v606
        %v608 = vpop.f32.mrf.mxu0
        %609 = vmatprep.mubr.f32.mxu0 0.0
        %610 = vmatmul.mubr.f32.gmra.mxu0 %v470
        %v611 = vpop.f32.mrf.mxu0
        %v612 = vadd.f32 %v430, %v611
        %v613 = vpop.f32.mrf.mxu0
        %614 = vmatprep.mubr.f32.mxu0 0.0
        %615 = vmatmul.mubr.f32.gmra.mxu0 %v473
        %v616 = vpop.f32.mrf.mxu0
        %v617 = vadd.f32 %v430, %v616
        %v618 = vpop.f32.mrf.mxu0
        %619 = vmatprep.mubr.f32.mxu0 0.0
        %620 = vmatmul.mubr.f32.gmra.mxu0 %v476
        %v621 = vpop.f32.mrf.mxu0
        %v622 = vadd.f32 %v430, %v621
        %v623 = vpop.f32.mrf.mxu0
        %624 = vmatprep.mubr.f32.mxu0 0.0
        %625 = vmatmul.mubr.f32.gmra.mxu0 %v479
        %v626 = vpop.f32.mrf.mxu0
        %v627 = vadd.f32 %v430, %v626
        %v628 = vpop.f32.mrf.mxu0
        %629 = vdwg.mxu0
        %v630 = vmax.f32 %v552, 0.0
        %v631 = vmax.f32 %v557, 0.0
        %v632 = vmax.f32 %v562, 0.0
        %v633 = vmax.f32 %v567, 0.0
        %v634 = vmax.f32 %v572, 0.0
        %v635 = vmax.f32 %v577, 0.0
        %v636 = vmax.f32 %v582, 0.0
        %v637 = vmax.f32 %v587, 0.0
        %v638 = vmax.f32 %v592, 0.0
        %v639 = vmax.f32 %v597, 0.0
        %v640 = vmax.f32 %v602, 0.0
        %v641 = vmax.f32 %v607, 0.0
        %v642 = vmax.f32 %v612, 0.0
        %v643 = vmax.f32 %v617, 0.0
        %v644 = vmax.f32 %v622, 0.0
        %v645 = vmax.f32 %v627, 0.0
        %v646 = vld [vmem:[%s3] sm:$0xff]
        %v647 = vld [vmem:[%s3 + $0x8] sm:$0xff]
        %v648 = vld [vmem:[%s3 + $0x10] sm:$0xff]
        %v649 = vld [vmem:[%s3 + $0x18] sm:$0xff]
        %v650 = vld [vmem:[%s3 + $0x20] sm:$0xff]
        %v651 = vld [vmem:[%s3 + $0x28] sm:$0xff]
        %v652 = vld [vmem:[%s3 + $0x30] sm:$0xff]
        %v653 = vld [vmem:[%s3 + $0x38] sm:$0xff]
        %v654 = vld [vmem:[%s3 + $0x40] sm:$0xff]
        %v655 = vld [vmem:[%s3 + $0x48] sm:$0xff]
        %v656 = vld [vmem:[%s3 + $0x50] sm:$0xff]
        %v657 = vld [vmem:[%s3 + $0x58] sm:$0xff]
        %v658 = vld [vmem:[%s3 + $0x60] sm:$0xff]
        %v659 = vld [vmem:[%s3 + $0x68] sm:$0xff]
        %v660 = vld [vmem:[%s3 + $0x70] sm:$0xff]
        %v661 = vld [vmem:[%s3 + $0x78] sm:$0xff]
        %v662 = vld [vmem:[%s4] sm:$0x1]
        %v664 = vlaneseq
        %v665 = vshrl.u32 %v664, 7
        %v666 = vsub.s32 0, %v665
        %v667 = vrot.slane %v662, %v666
        %669 = vmatprep.subr.mxu0 0.0
        %670 = vmatpush1.msra.mxu0 %v661
        %671 = vmatprep.subr.mxu0 0.0
        %672 = vmatpush1.msra.mxu0 %v660
        %673 = vmatprep.subr.mxu0 0.0
        %674 = vmatpush1.msra.mxu0 %v659
        %675 = vmatprep.subr.mxu0 0.0
        %676 = vmatpush1.msra.mxu0 %v658
        %677 = vmatprep.subr.mxu0 0.0
        %678 = vmatpush1.msra.mxu0 %v657
        %679 = vmatprep.subr.mxu0 0.0
        %680 = vmatpush1.msra.mxu0 %v656
        %681 = vmatprep.subr.mxu0 0.0
        %682 = vmatpush1.msra.mxu0 %v655
        %683 = vmatprep.subr.mxu0 0.0
        %684 = vmatpush1.msra.mxu0 %v654
        %685 = vmatprep.subr.mxu0 0.0
        %686 = vmatpush1.msra.mxu0 %v653
        %687 = vmatprep.subr.mxu0 0.0
        %688 = vmatpush1.msra.mxu0 %v652
        %689 = vmatprep.subr.mxu0 0.0
        %690 = vmatpush1.msra.mxu0 %v651
        %691 = vmatprep.subr.mxu0 0.0
        %692 = vmatpush1.msra.mxu0 %v650
        %693 = vmatprep.subr.mxu0 0.0
        %694 = vmatpush1.msra.mxu0 %v649
        %695 = vmatprep.subr.mxu0 0.0
        %696 = vmatpush1.msra.mxu0 %v648
        %697 = vmatprep.subr.mxu0 0.0
        %698 = vmatpush1.msra.mxu0 %v647
        %699 = vmatprep.subr.mxu0 0.0
        %700 = vmatpush1.msra.mxu0 %v646
        %701 = vmatprep.subr.mxu0 0.0
        %702 = vmatpush2.msra.mxu0 0.0
        %703 = vmatprep.subr.mxu0 0.0
        %704 = vmatpush2.msra.mxu0 0.0
        %705 = vmatprep.subr.mxu0 0.0
        %706 = vmatpush2.msra.mxu0 0.0
        %707 = vmatprep.subr.mxu0 0.0
        %708 = vmatpush2.msra.mxu0 0.0
        %709 = vmatprep.subr.mxu0 0.0
        %710 = vmatpush2.msra.mxu0 0.0
        %711 = vmatprep.subr.mxu0 0.0
        %712 = vmatpush2.msra.mxu0 0.0
        %713 = vmatprep.subr.mxu0 0.0
        %714 = vmatpush2.msra.mxu0 0.0
        %715 = vmatprep.subr.mxu0 0.0
        %716 = vmatpush2.msra.mxu0 0.0
        %717 = vmatprep.subr.mxu0 0.0
        %718 = vmatpush2.msra.mxu0 0.0
        %719 = vmatprep.subr.mxu0 0.0
        %720 = vmatpush2.msra.mxu0 0.0
        %721 = vmatprep.subr.mxu0 0.0
        %722 = vmatpush2.msra.mxu0 0.0
        %723 = vmatprep.subr.mxu0 0.0
        %724 = vmatpush2.msra.mxu0 0.0
        %725 = vmatprep.subr.mxu0 0.0
        %726 = vmatpush2.msra.mxu0 0.0
        %727 = vmatprep.subr.mxu0 0.0
        %728 = vmatpush2.msra.mxu0 0.0
        %729 = vmatprep.subr.mxu0 0.0
        %730 = vmatpush2.msra.mxu0 0.0
        %731 = vmatprep.subr.mxu0 0.0
        %732 = vmatpush2.msra.mxu0 0.0
        %733 = vmatprep.mubr.f32.mxu0 0.0
        %734 = vmatmul.mubr.f32.gmra.mxu0 %v630
        %v735 = vpop.f32.mrf.mxu0
        %v736 = vadd.f32 %v667, %v735
        %v737 = vpop.f32.mrf.mxu0
        %738 = vmatprep.mubr.f32.mxu0 0.0
        %739 = vmatmul.mubr.f32.gmra.mxu0 %v631
        %v740 = vpop.f32.mrf.mxu0
        %v741 = vadd.f32 %v667, %v740
        %v742 = vpop.f32.mrf.mxu0
        %743 = vmatprep.mubr.f32.mxu0 0.0
        %744 = vmatmul.mubr.f32.gmra.mxu0 %v632
        %v745 = vpop.f32.mrf.mxu0
        %v746 = vadd.f32 %v667, %v745
        %v747 = vpop.f32.mrf.mxu0
        %748 = vmatprep.mubr.f32.mxu0 0.0
        %749 = vmatmul.mubr.f32.gmra.mxu0 %v633
        %v750 = vpop.f32.mrf.mxu0
        %v751 = vadd.f32 %v667, %v750
        %v752 = vpop.f32.mrf.mxu0
        %753 = vmatprep.mubr.f32.mxu0 0.0
        %754 = vmatmul.mubr.f32.gmra.mxu0 %v634
        %v755 = vpop.f32.mrf.mxu0
        %v756 = vadd.f32 %v667, %v755
        %v757 = vpop.f32.mrf.mxu0
        %758 = vmatprep.mubr.f32.mxu0 0.0
        %759 = vmatmul.mubr.f32.gmra.mxu0 %v635
        %v760 = vpop.f32.mrf.mxu0
        %v761 = vadd.f32 %v667, %v760
        %v762 = vpop.f32.mrf.mxu0
        %763 = vmatprep.mubr.f32.mxu0 0.0
        %764 = vmatmul.mubr.f32.gmra.mxu0 %v636
        %v765 = vpop.f32.mrf.mxu0
        %v766 = vadd.f32 %v667, %v765
        %v767 = vpop.f32.mrf.mxu0
        %768 = vmatprep.mubr.f32.mxu0 0.0
        %769 = vmatmul.mubr.f32.gmra.mxu0 %v637
        %v770 = vpop.f32.mrf.mxu0
        %v771 = vadd.f32 %v667, %v770
        %v772 = vpop.f32.mrf.mxu0
        %773 = vmatprep.mubr.f32.mxu0 0.0
        %774 = vmatmul.mubr.f32.gmra.mxu0 %v638
        %v775 = vpop.f32.mrf.mxu0
        %v776 = vadd.f32 %v667, %v775
        %v777 = vpop.f32.mrf.mxu0
        %778 = vmatprep.mubr.f32.mxu0 0.0
        %779 = vmatmul.mubr.f32.gmra.mxu0 %v639
        %v780 = vpop.f32.mrf.mxu0
        %v781 = vadd.f32 %v667, %v780
        %v782 = vpop.f32.mrf.mxu0
        %783 = vmatprep.mubr.f32.mxu0 0.0
        %784 = vmatmul.mubr.f32.gmra.mxu0 %v640
        %v785 = vpop.f32.mrf.mxu0
        %v786 = vadd.f32 %v667, %v785
        %v787 = vpop.f32.mrf.mxu0
        %788 = vmatprep.mubr.f32.mxu0 0.0
        %789 = vmatmul.mubr.f32.gmra.mxu0 %v641
        %v790 = vpop.f32.mrf.mxu0
        %v791 = vadd.f32 %v667, %v790
        %v792 = vpop.f32.mrf.mxu0
        %793 = vmatprep.mubr.f32.mxu0 0.0
        %794 = vmatmul.mubr.f32.gmra.mxu0 %v642
        %v795 = vpop.f32.mrf.mxu0
        %v796 = vadd.f32 %v667, %v795
        %v797 = vpop.f32.mrf.mxu0
        %798 = vmatprep.mubr.f32.mxu0 0.0
        %799 = vmatmul.mubr.f32.gmra.mxu0 %v643
        %v800 = vpop.f32.mrf.mxu0
        %v801 = vadd.f32 %v667, %v800
        %v802 = vpop.f32.mrf.mxu0
        %803 = vmatprep.mubr.f32.mxu0 0.0
        %804 = vmatmul.mubr.f32.gmra.mxu0 %v644
        %v805 = vpop.f32.mrf.mxu0
        %v806 = vadd.f32 %v667, %v805
        %v807 = vpop.f32.mrf.mxu0
        %808 = vmatprep.mubr.f32.mxu0 0.0
        %809 = vmatmul.mubr.f32.gmra.mxu0 %v645
        %v810 = vpop.f32.mrf.mxu0
        %v811 = vadd.f32 %v667, %v810
        %v812 = vpop.f32.mrf.mxu0
        %813 = vdwg.mxu0
        %v814 = vmax.f32 %v736, 0.0
        %v815 = vmax.f32 %v741, 0.0
        %v816 = vmax.f32 %v746, 0.0
        %v817 = vmax.f32 %v751, 0.0
        %v818 = vmax.f32 %v756, 0.0
        %v819 = vmax.f32 %v761, 0.0
        %v820 = vmax.f32 %v766, 0.0
        %v821 = vmax.f32 %v771, 0.0
        %v822 = vmax.f32 %v776, 0.0
        %v823 = vmax.f32 %v781, 0.0
        %v824 = vmax.f32 %v786, 0.0
        %v825 = vmax.f32 %v791, 0.0
        %v826 = vmax.f32 %v796, 0.0
        %v827 = vmax.f32 %v801, 0.0
        %v828 = vmax.f32 %v806, 0.0
        %v829 = vmax.f32 %v811, 0.0
        %v830 = vld [vmem:[%s5] sm:$0xff]
        %v831 = vld [vmem:[%s5 + $0x8] sm:$0xff]
        %v832 = vld [vmem:[%s5 + $0x10] sm:$0xff]
        %v833 = vld [vmem:[%s5 + $0x18] sm:$0xff]
        %v834 = vld [vmem:[%s5 + $0x20] sm:$0xff]
        %v835 = vld [vmem:[%s5 + $0x28] sm:$0xff]
        %v836 = vld [vmem:[%s5 + $0x30] sm:$0xff]
        %v837 = vld [vmem:[%s5 + $0x38] sm:$0xff]
        %v838 = vld [vmem:[%s6] sm:$0x1]
        %v840 = vlaneseq
        %v841 = vshrl.u32 %v840, 7
        %v842 = vsub.s32 0, %v841
        %v843 = vrot.slane %v838, %v842
        %vm845 = vcmask 523264
        %v847 = vsel %vm845, %v814, 0
        %v850 = vsel %vm845, %v815, 0
        %v853 = vsel %vm845, %v816, 0
        %v856 = vsel %vm845, %v817, 0
        %v859 = vsel %vm845, %v818, 0
        %v862 = vsel %vm845, %v819, 0
        %v865 = vsel %vm845, %v820, 0
        %v868 = vsel %vm845, %v821, 0
        %v871 = vsel %vm845, %v822, 0
        %v874 = vsel %vm845, %v823, 0
        %v877 = vsel %vm845, %v824, 0
        %v880 = vsel %vm845, %v825, 0
        %v883 = vsel %vm845, %v826, 0
        %v886 = vsel %vm845, %v827, 0
        %v889 = vsel %vm845, %v828, 0
        %v892 = vsel %vm845, %v829, 0
        %894 = vmatprep.subr.mxu0 0.0
        %895 = vmatpush1.msra.mxu0 0.0
        %896 = vmatprep.subr.mxu0 0.0
        %897 = vmatpush1.msra.mxu0 0.0
        %898 = vmatprep.subr.mxu0 0.0
        %899 = vmatpush1.msra.mxu0 0.0
        %900 = vmatprep.subr.mxu0 0.0
        %901 = vmatpush1.msra.mxu0 0.0
        %902 = vmatprep.subr.mxu0 0.0
        %903 = vmatpush1.msra.mxu0 0.0
        %904 = vmatprep.subr.mxu0 0.0
        %905 = vmatpush1.msra.mxu0 0.0
        %906 = vmatprep.subr.mxu0 0.0
        %907 = vmatpush1.msra.mxu0 0.0
        %908 = vmatprep.subr.mxu0 0.0
        %909 = vmatpush1.msra.mxu0 0.0
        %910 = vmatprep.subr.mxu0 0.0
        %911 = vmatpush1.msra.mxu0 %v837
        %912 = vmatprep.subr.mxu0 0.0
        %913 = vmatpush1.msra.mxu0 %v836
        %914 = vmatprep.subr.mxu0 0.0
        %915 = vmatpush1.msra.mxu0 %v835
        %916 = vmatprep.subr.mxu0 0.0
        %917 = vmatpush1.msra.mxu0 %v834
        %918 = vmatprep.subr.mxu0 0.0
        %919 = vmatpush1.msra.mxu0 %v833
        %920 = vmatprep.subr.mxu0 0.0
        %921 = vmatpush1.msra.mxu0 %v832
        %922 = vmatprep.subr.mxu0 0.0
        %923 = vmatpush1.msra.mxu0 %v831
        %924 = vmatprep.subr.mxu0 0.0
        %925 = vmatpush1.msra.mxu0 %v830
        %926 = vmatprep.subr.mxu0 0.0
        %927 = vmatpush2.msra.mxu0 0.0
        %928 = vmatprep.subr.mxu0 0.0
        %929 = vmatpush2.msra.mxu0 0.0
        %930 = vmatprep.subr.mxu0 0.0
        %931 = vmatpush2.msra.mxu0 0.0
        %932 = vmatprep.subr.mxu0 0.0
        %933 = vmatpush2.msra.mxu0 0.0
        %934 = vmatprep.subr.mxu0 0.0
        %935 = vmatpush2.msra.mxu0 0.0
        %936 = vmatprep.subr.mxu0 0.0
        %937 = vmatpush2.msra.mxu0 0.0
        %938 = vmatprep.subr.mxu0 0.0
        %939 = vmatpush2.msra.mxu0 0.0
        %940 = vmatprep.subr.mxu0 0.0
        %941 = vmatpush2.msra.mxu0 0.0
        %942 = vmatprep.subr.mxu0 0.0
        %943 = vmatpush2.msra.mxu0 0.0
        %944 = vmatprep.subr.mxu0 0.0
        %945 = vmatpush2.msra.mxu0 0.0
        %946 = vmatprep.subr.mxu0 0.0
        %947 = vmatpush2.msra.mxu0 0.0
        %948 = vmatprep.subr.mxu0 0.0
        %949 = vmatpush2.msra.mxu0 0.0
        %950 = vmatprep.subr.mxu0 0.0
        %951 = vmatpush2.msra.mxu0 0.0
        %952 = vmatprep.subr.mxu0 0.0
        %953 = vmatpush2.msra.mxu0 0.0
        %954 = vmatprep.subr.mxu0 0.0
        %955 = vmatpush2.msra.mxu0 0.0
        %956 = vmatprep.subr.mxu0 0.0
        %957 = vmatpush2.msra.mxu0 0.0
        %958 = vmatprep.mubr.f32.mxu0 0.0
        %959 = vmatmul.mubr.f32.gmra.mxu0 %v847
        %v960 = vpop.f32.mrf.mxu0
        %v961 = vadd.f32 %v843, %v960
        %v962 = vpop.f32.mrf.mxu0
        %963 = vmatprep.mubr.f32.mxu0 0.0
        %964 = vmatmul.mubr.f32.gmra.mxu0 %v850
        %v965 = vpop.f32.mrf.mxu0
        %v966 = vadd.f32 %v843, %v965
        %v967 = vpop.f32.mrf.mxu0
        %968 = vmatprep.mubr.f32.mxu0 0.0
        %969 = vmatmul.mubr.f32.gmra.mxu0 %v853
        %v970 = vpop.f32.mrf.mxu0
        %v971 = vadd.f32 %v843, %v970
        %v972 = vpop.f32.mrf.mxu0
        %973 = vmatprep.mubr.f32.mxu0 0.0
        %974 = vmatmul.mubr.f32.gmra.mxu0 %v856
        %v975 = vpop.f32.mrf.mxu0
        %v976 = vadd.f32 %v843, %v975
        %v977 = vpop.f32.mrf.mxu0
        %978 = vmatprep.mubr.f32.mxu0 0.0
        %979 = vmatmul.mubr.f32.gmra.mxu0 %v859
        %v980 = vpop.f32.mrf.mxu0
        %v981 = vadd.f32 %v843, %v980
        %v982 = vpop.f32.mrf.mxu0
        %983 = vmatprep.mubr.f32.mxu0 0.0
        %984 = vmatmul.mubr.f32.gmra.mxu0 %v862
        %v985 = vpop.f32.mrf.mxu0
        %v986 = vadd.f32 %v843, %v985
        %v987 = vpop.f32.mrf.mxu0
        %988 = vmatprep.mubr.f32.mxu0 0.0
        %989 = vmatmul.mubr.f32.gmra.mxu0 %v865
        %v990 = vpop.f32.mrf.mxu0
        %v991 = vadd.f32 %v843, %v990
        %v992 = vpop.f32.mrf.mxu0
        %993 = vmatprep.mubr.f32.mxu0 0.0
        %994 = vmatmul.mubr.f32.gmra.mxu0 %v868
        %v995 = vpop.f32.mrf.mxu0
        %v996 = vadd.f32 %v843, %v995
        %v997 = vpop.f32.mrf.mxu0
        %998 = vmatprep.mubr.f32.mxu0 0.0
        %999 = vmatmul.mubr.f32.gmra.mxu0 %v871
        %v1000 = vpop.f32.mrf.mxu0
        %v1001 = vadd.f32 %v843, %v1000
        %v1002 = vpop.f32.mrf.mxu0
        %1003 = vmatprep.mubr.f32.mxu0 0.0
        %1004 = vmatmul.mubr.f32.gmra.mxu0 %v874
        %v1005 = vpop.f32.mrf.mxu0
        %v1006 = vadd.f32 %v843, %v1005
        %v1007 = vpop.f32.mrf.mxu0
        %1008 = vmatprep.mubr.f32.mxu0 0.0
        %1009 = vmatmul.mubr.f32.gmra.mxu0 %v877
        %v1010 = vpop.f32.mrf.mxu0
        %v1011 = vadd.f32 %v843, %v1010
        %v1012 = vpop.f32.mrf.mxu0
        %1013 = vmatprep.mubr.f32.mxu0 0.0
        %1014 = vmatmul.mubr.f32.gmra.mxu0 %v880
        %v1015 = vpop.f32.mrf.mxu0
        %v1016 = vadd.f32 %v843, %v1015
        %v1017 = vpop.f32.mrf.mxu0
        %1018 = vmatprep.mubr.f32.mxu0 0.0
        %1019 = vmatmul.mubr.f32.gmra.mxu0 %v883
        %v1020 = vpop.f32.mrf.mxu0
        %v1021 = vadd.f32 %v843, %v1020
        %v1022 = vpop.f32.mrf.mxu0
        %1023 = vmatprep.mubr.f32.mxu0 0.0
        %1024 = vmatmul.mubr.f32.gmra.mxu0 %v886
        %v1025 = vpop.f32.mrf.mxu0
        %v1026 = vadd.f32 %v843, %v1025
        %v1027 = vpop.f32.mrf.mxu0
        %1028 = vmatprep.mubr.f32.mxu0 0.0
        %1029 = vmatmul.mubr.f32.gmra.mxu0 %v889
        %v1030 = vpop.f32.mrf.mxu0
        %v1031 = vadd.f32 %v843, %v1030
        %v1032 = vpop.f32.mrf.mxu0
        %1033 = vmatprep.mubr.f32.mxu0 0.0
        %1034 = vmatmul.mubr.f32.gmra.mxu0 %v892
        %v1035 = vpop.f32.mrf.mxu0
        %v1036 = vadd.f32 %v843, %v1035
        %v1037 = vpop.f32.mrf.mxu0
        %1038 = vdwg.mxu0
        %v1039 = vmax.f32 %v961, 0.0
        %v1040 = vmax.f32 %v966, 0.0
        %v1041 = vmax.f32 %v971, 0.0
        %v1042 = vmax.f32 %v976, 0.0
        %v1043 = vmax.f32 %v981, 0.0
        %v1044 = vmax.f32 %v986, 0.0
        %v1045 = vmax.f32 %v991, 0.0
        %v1046 = vmax.f32 %v996, 0.0
        %v1047 = vmax.f32 %v1001, 0.0
        %v1048 = vmax.f32 %v1006, 0.0
        %v1049 = vmax.f32 %v1011, 0.0
        %v1050 = vmax.f32 %v1016, 0.0
        %v1051 = vmax.f32 %v1021, 0.0
        %v1052 = vmax.f32 %v1026, 0.0
        %v1053 = vmax.f32 %v1031, 0.0
        %v1054 = vmax.f32 %v1036, 0.0
        %v1055 = vld [vmem:[%s7] sm:$0xff]
        %v1056 = vld [vmem:[%s7 + $0x8] sm:$0xff]
        %v1057 = vld [vmem:[%s7 + $0x10] sm:$0xff]
        %v1058 = vld [vmem:[%s7 + $0x18] sm:$0xff]
        %v1059 = vld [vmem:[%s8] sm:$0x1]
        %v1061 = vlaneseq
        %v1062 = vshrl.u32 %v1061, 7
        %v1063 = vsub.s32 0, %v1062
        %v1064 = vrot.slane %v1059, %v1063
        %vm1066 = vcmask 261120
        %v1068 = vsel %vm1066, %v1039, 0
        %v1071 = vsel %vm1066, %v1040, 0
        %v1074 = vsel %vm1066, %v1041, 0
        %v1077 = vsel %vm1066, %v1042, 0
        %v1080 = vsel %vm1066, %v1043, 0
        %v1083 = vsel %vm1066, %v1044, 0
        %v1086 = vsel %vm1066, %v1045, 0
        %v1089 = vsel %vm1066, %v1046, 0
        %v1092 = vsel %vm1066, %v1047, 0
        %v1095 = vsel %vm1066, %v1048, 0
        %v1098 = vsel %vm1066, %v1049, 0
        %v1101 = vsel %vm1066, %v1050, 0
        %v1104 = vsel %vm1066, %v1051, 0
        %v1107 = vsel %vm1066, %v1052, 0
        %v1110 = vsel %vm1066, %v1053, 0
        %v1113 = vsel %vm1066, %v1054, 0
        %1115 = vmatprep.subr.mxu0 0.0
        %1116 = vmatpush1.msra.mxu0 0.0
        %1117 = vmatprep.subr.mxu0 0.0
        %1118 = vmatpush1.msra.mxu0 0.0
        %1119 = vmatprep.subr.mxu0 0.0
        %1120 = vmatpush1.msra.mxu0 0.0
        %1121 = vmatprep.subr.mxu0 0.0
        %1122 = vmatpush1.msra.mxu0 0.0
        %1123 = vmatprep.subr.mxu0 0.0
        %1124 = vmatpush1.msra.mxu0 0.0
        %1125 = vmatprep.subr.mxu0 0.0
        %1126 = vmatpush1.msra.mxu0 0.0
        %1127 = vmatprep.subr.mxu0 0.0
        %1128 = vmatpush1.msra.mxu0 0.0
        %1129 = vmatprep.subr.mxu0 0.0
        %1130 = vmatpush1.msra.mxu0 0.0
        %1131 = vmatprep.subr.mxu0 0.0
        %1132 = vmatpush1.msra.mxu0 0.0
        %1133 = vmatprep.subr.mxu0 0.0
        %1134 = vmatpush1.msra.mxu0 0.0
        %1135 = vmatprep.subr.mxu0 0.0
        %1136 = vmatpush1.msra.mxu0 0.0
        %1137 = vmatprep.subr.mxu0 0.0
        %1138 = vmatpush1.msra.mxu0 0.0
        %1139 = vmatprep.subr.mxu0 0.0
        %1140 = vmatpush1.msra.mxu0 %v1058
        %1141 = vmatprep.subr.mxu0 0.0
        %1142 = vmatpush1.msra.mxu0 %v1057
        %1143 = vmatprep.subr.mxu0 0.0
        %1144 = vmatpush1.msra.mxu0 %v1056
        %1145 = vmatprep.subr.mxu0 0.0
        %1146 = vmatpush1.msra.mxu0 %v1055
        %1147 = vmatprep.subr.mxu0 0.0
        %1148 = vmatpush2.msra.mxu0 0.0
        %1149 = vmatprep.subr.mxu0 0.0
        %1150 = vmatpush2.msra.mxu0 0.0
        %1151 = vmatprep.subr.mxu0 0.0
        %1152 = vmatpush2.msra.mxu0 0.0
        %1153 = vmatprep.subr.mxu0 0.0
        %1154 = vmatpush2.msra.mxu0 0.0
        %1155 = vmatprep.subr.mxu0 0.0
        %1156 = vmatpush2.msra.mxu0 0.0
        %1157 = vmatprep.subr.mxu0 0.0
        %1158 = vmatpush2.msra.mxu0 0.0
        %1159 = vmatprep.subr.mxu0 0.0
        %1160 = vmatpush2.msra.mxu0 0.0
        %1161 = vmatprep.subr.mxu0 0.0
        %1162 = vmatpush2.msra.mxu0 0.0
        %1163 = vmatprep.subr.mxu0 0.0
        %1164 = vmatpush2.msra.mxu0 0.0
        %1165 = vmatprep.subr.mxu0 0.0
        %1166 = vmatpush2.msra.mxu0 0.0
        %1167 = vmatprep.subr.mxu0 0.0
        %1168 = vmatpush2.msra.mxu0 0.0
        %1169 = vmatprep.subr.mxu0 0.0
        %1170 = vmatpush2.msra.mxu0 0.0
        %1171 = vmatprep.subr.mxu0 0.0
        %1172 = vmatpush2.msra.mxu0 0.0
        %1173 = vmatprep.subr.mxu0 0.0
        %1174 = vmatpush2.msra.mxu0 0.0
        %1175 = vmatprep.subr.mxu0 0.0
        %1176 = vmatpush2.msra.mxu0 0.0
        %1177 = vmatprep.subr.mxu0 0.0
        %1178 = vmatpush2.msra.mxu0 0.0
        %1179 = vmatprep.mubr.f32.mxu0 0.0
        %1180 = vmatmul.mubr.f32.gmra.mxu0 %v1068
        %v1181 = vpop.f32.mrf.mxu0
        %v1182 = vadd.f32 %v1064, %v1181
        %v1183 = vpop.f32.mrf.mxu0
        %1184 = vmatprep.mubr.f32.mxu0 0.0
        %1185 = vmatmul.mubr.f32.gmra.mxu0 %v1071
        %v1186 = vpop.f32.mrf.mxu0
        %v1187 = vadd.f32 %v1064, %v1186
        %v1188 = vpop.f32.mrf.mxu0
        %1189 = vmatprep.mubr.f32.mxu0 0.0
        %1190 = vmatmul.mubr.f32.gmra.mxu0 %v1074
        %v1191 = vpop.f32.mrf.mxu0
        %v1192 = vadd.f32 %v1064, %v1191
        %v1193 = vpop.f32.mrf.mxu0
        %1194 = vmatprep.mubr.f32.mxu0 0.0
        %1195 = vmatmul.mubr.f32.gmra.mxu0 %v1077
        %v1196 = vpop.f32.mrf.mxu0
        %v1197 = vadd.f32 %v1064, %v1196
        %v1198 = vpop.f32.mrf.mxu0
        %1199 = vmatprep.mubr.f32.mxu0 0.0
        %1200 = vmatmul.mubr.f32.gmra.mxu0 %v1080
        %v1201 = vpop.f32.mrf.mxu0
        %v1202 = vadd.f32 %v1064, %v1201
        %v1203 = vpop.f32.mrf.mxu0
        %1204 = vmatprep.mubr.f32.mxu0 0.0
        %1205 = vmatmul.mubr.f32.gmra.mxu0 %v1083
        %v1206 = vpop.f32.mrf.mxu0
        %v1207 = vadd.f32 %v1064, %v1206
        %v1208 = vpop.f32.mrf.mxu0
        %1209 = vmatprep.mubr.f32.mxu0 0.0
        %1210 = vmatmul.mubr.f32.gmra.mxu0 %v1086
        %v1211 = vpop.f32.mrf.mxu0
        %v1212 = vadd.f32 %v1064, %v1211
        %v1213 = vpop.f32.mrf.mxu0
        %1214 = vmatprep.mubr.f32.mxu0 0.0
        %1215 = vmatmul.mubr.f32.gmra.mxu0 %v1089
        %v1216 = vpop.f32.mrf.mxu0
        %v1217 = vadd.f32 %v1064, %v1216
        %v1218 = vpop.f32.mrf.mxu0
        %1219 = vmatprep.mubr.f32.mxu0 0.0
        %1220 = vmatmul.mubr.f32.gmra.mxu0 %v1092
        %v1221 = vpop.f32.mrf.mxu0
        %v1222 = vadd.f32 %v1064, %v1221
        %v1223 = vpop.f32.mrf.mxu0
        %1224 = vmatprep.mubr.f32.mxu0 0.0
        %1225 = vmatmul.mubr.f32.gmra.mxu0 %v1095
        %v1226 = vpop.f32.mrf.mxu0
        %v1227 = vadd.f32 %v1064, %v1226
        %v1228 = vpop.f32.mrf.mxu0
        %1229 = vmatprep.mubr.f32.mxu0 0.0
        %1230 = vmatmul.mubr.f32.gmra.mxu0 %v1098
        %v1231 = vpop.f32.mrf.mxu0
        %v1232 = vadd.f32 %v1064, %v1231
        %v1233 = vpop.f32.mrf.mxu0
        %1234 = vmatprep.mubr.f32.mxu0 0.0
        %1235 = vmatmul.mubr.f32.gmra.mxu0 %v1101
        %v1236 = vpop.f32.mrf.mxu0
        %v1237 = vadd.f32 %v1064, %v1236
        %v1238 = vpop.f32.mrf.mxu0
        %1239 = vmatprep.mubr.f32.mxu0 0.0
        %1240 = vmatmul.mubr.f32.gmra.mxu0 %v1104
        %v1241 = vpop.f32.mrf.mxu0
        %v1242 = vadd.f32 %v1064, %v1241
        %v1243 = vpop.f32.mrf.mxu0
        %1244 = vmatprep.mubr.f32.mxu0 0.0
        %1245 = vmatmul.mubr.f32.gmra.mxu0 %v1107
        %v1246 = vpop.f32.mrf.mxu0
        %v1247 = vadd.f32 %v1064, %v1246
        %v1248 = vpop.f32.mrf.mxu0
        %1249 = vmatprep.mubr.f32.mxu0 0.0
        %1250 = vmatmul.mubr.f32.gmra.mxu0 %v1110
        %v1251 = vpop.f32.mrf.mxu0
        %v1252 = vadd.f32 %v1064, %v1251
        %v1253 = vpop.f32.mrf.mxu0
        %1254 = vmatprep.mubr.f32.mxu0 0.0
        %1255 = vmatmul.mubr.f32.gmra.mxu0 %v1113
        %v1256 = vpop.f32.mrf.mxu0
        %v1257 = vadd.f32 %v1064, %v1256
        %v1258 = vpop.f32.mrf.mxu0
        %1259 = vdwg.mxu0
        %v1260 = vmax.f32 %v1182, 0.0
        %v1261 = vmax.f32 %v1187, 0.0
        %v1262 = vmax.f32 %v1192, 0.0
        %v1263 = vmax.f32 %v1197, 0.0
        %v1264 = vmax.f32 %v1202, 0.0
        %v1265 = vmax.f32 %v1207, 0.0
        %v1266 = vmax.f32 %v1212, 0.0
        %v1267 = vmax.f32 %v1217, 0.0
        %v1268 = vmax.f32 %v1222, 0.0
        %v1269 = vmax.f32 %v1227, 0.0
        %v1270 = vmax.f32 %v1232, 0.0
        %v1271 = vmax.f32 %v1237, 0.0
        %v1272 = vmax.f32 %v1242, 0.0
        %v1273 = vmax.f32 %v1247, 0.0
        %v1274 = vmax.f32 %v1252, 0.0
        %v1275 = vmax.f32 %v1257, 0.0
        %v1276 = vld [vmem:[%s9] sm:$0xff]
        %v1277 = vld [vmem:[%s10] sm:$0xff]
        %1279 = vset.pattern.permute.xlu0 0
        %1280 = vperm.xlu0 %1279, %v1277
        %v1281 = vpop.permute.xlu0 %1280
        %vm1283 = vcmask 130048
        %v1285 = vsel %vm1283, %v1276, 0
        %v1288 = vsel %vm1283, %v1260, 0
        %v1291 = vsel %vm1283, %v1261, 0
        %v1294 = vsel %vm1283, %v1262, 0
        %v1297 = vsel %vm1283, %v1263, 0
        %v1300 = vsel %vm1283, %v1264, 0
        %v1303 = vsel %vm1283, %v1265, 0
        %v1306 = vsel %vm1283, %v1266, 0
        %v1309 = vsel %vm1283, %v1267, 0
        %v1312 = vsel %vm1283, %v1268, 0
        %v1315 = vsel %vm1283, %v1269, 0
        %v1318 = vsel %vm1283, %v1270, 0
        %v1321 = vsel %vm1283, %v1271, 0
        %v1324 = vsel %vm1283, %v1272, 0
        %v1327 = vsel %vm1283, %v1273, 0
        %v1330 = vsel %vm1283, %v1274, 0
        %v1333 = vsel %vm1283, %v1275, 0
        %1335 = vmatprep.subr.mxu0 0.0
        %1336 = vmatpush1.xpose.msra.mxu0 %v1333
        %1337 = vmatprep.subr.mxu0 0.0
        %1338 = vmatpush1.xpose.msra.mxu0 %v1330
        %1339 = vmatprep.subr.mxu0 0.0
        %1340 = vmatpush1.xpose.msra.mxu0 %v1327
        %1341 = vmatprep.subr.mxu0 0.0
        %1342 = vmatpush1.xpose.msra.mxu0 %v1324
        %1343 = vmatprep.subr.mxu0 0.0
        %1344 = vmatpush1.xpose.msra.mxu0 %v1321
        %1345 = vmatprep.subr.mxu0 0.0
        %1346 = vmatpush1.xpose.msra.mxu0 %v1318
        %1347 = vmatprep.subr.mxu0 0.0
        %1348 = vmatpush1.xpose.msra.mxu0 %v1315
        %1349 = vmatprep.subr.mxu0 0.0
        %1350 = vmatpush1.xpose.msra.mxu0 %v1312
        %1351 = vmatprep.subr.mxu0 0.0
        %1352 = vmatpush1.xpose.msra.mxu0 %v1309
        %1353 = vmatprep.subr.mxu0 0.0
        %1354 = vmatpush1.xpose.msra.mxu0 %v1306
        %1355 = vmatprep.subr.mxu0 0.0
        %1356 = vmatpush1.xpose.msra.mxu0 %v1303
        %1357 = vmatprep.subr.mxu0 0.0
        %1358 = vmatpush1.xpose.msra.mxu0 %v1300
        %1359 = vmatprep.subr.mxu0 0.0
        %1360 = vmatpush1.xpose.msra.mxu0 %v1297
        %1361 = vmatprep.subr.mxu0 0.0
        %1362 = vmatpush1.xpose.msra.mxu0 %v1294
        %1363 = vmatprep.subr.mxu0 0.0
        %1364 = vmatpush1.xpose.msra.mxu0 %v1291
        %1365 = vmatprep.subr.mxu0 0.0
        %1366 = vmatpush1.xpose.msra.mxu0 %v1288
        %1367 = vmatprep.subr.mxu0 0.0
        %1368 = vmatpush2.xpose.msra.mxu0 0.0
        %1369 = vmatprep.subr.mxu0 0.0
        %1370 = vmatpush2.xpose.msra.mxu0 0.0
        %1371 = vmatprep.subr.mxu0 0.0
        %1372 = vmatpush2.xpose.msra.mxu0 0.0
        %1373 = vmatprep.subr.mxu0 0.0
        %1374 = vmatpush2.xpose.msra.mxu0 0.0
        %1375 = vmatprep.subr.mxu0 0.0
        %1376 = vmatpush2.xpose.msra.mxu0 0.0
        %1377 = vmatprep.subr.mxu0 0.0
        %1378 = vmatpush2.xpose.msra.mxu0 0.0
        %1379 = vmatprep.subr.mxu0 0.0
        %1380 = vmatpush2.xpose.msra.mxu0 0.0
        %1381 = vmatprep.subr.mxu0 0.0
        %1382 = vmatpush2.xpose.msra.mxu0 0.0
        %1383 = vmatprep.subr.mxu0 0.0
        %1384 = vmatpush2.xpose.msra.mxu0 0.0
        %1385 = vmatprep.subr.mxu0 0.0
        %1386 = vmatpush2.xpose.msra.mxu0 0.0
        %1387 = vmatprep.subr.mxu0 0.0
        %1388 = vmatpush2.xpose.msra.mxu0 0.0
        %1389 = vmatprep.subr.mxu0 0.0
        %1390 = vmatpush2.xpose.msra.mxu0 0.0
        %1391 = vmatprep.subr.mxu0 0.0
        %1392 = vmatpush2.xpose.msra.mxu0 0.0
        %1393 = vmatprep.subr.mxu0 0.0
        %1394 = vmatpush2.xpose.msra.mxu0 0.0
        %1395 = vmatprep.subr.mxu0 0.0
        %1396 = vmatpush2.xpose.msra.mxu0 0.0
        %1397 = vmatprep.subr.mxu0 0.0
        %1398 = vmatpush2.xpose.msra.mxu0 0.0
        %1399 = vmatprep.mubr.f32.mxu0 0.0
        %1400 = vmatmul.mubr.f32.gmra.mxu0 %v1285
        %v1401 = vpop.f32.mrf.mxu0
        %v1402 = vadd.f32 %v1281, %v1401
        %v1403 = vpop.f32.mrf.mxu0
        %1404 = vdwg.mxu0
        %1405 = vst [vmem:[%s392] sm:$0x3] %v1402
        %s1406 = sand.u32 %s269, 1
        %s1407 = scalar_lea.sflag [#allocation3], %s1406
        %s1408 = sand.u32 %s269, 1
        %s1409 = smul.addr %s1408, 2
        %s1410 = scalar_lea.vmem [#allocation2], %s1409
        // Predicated region
        $region65: #{tpu_custom_call.1} parent=63 // pred_check
          %p1411 = pneg %p279
        $region66: #{tpu_custom_call.1} parent=63 // pred_check_branch
          %1413 = sbr.rel (%p1411) target = $region68
        $region67: #{tpu_custom_call.1} parent=63 // pred_region
          %s1415 = ssub.s32 32, 32
          %1416 = vsyncadd %s1407, %s1415
          %s1417 = smul.addr %s25, 32
          %s1418 = scalar_lea.hbm %s11, %s1417
          %s1420 = sshll.u32 %s1410, 4
          %s1421 = int_to_ptr.vmem [resolvable:$true] %s1420
          %1423 = dma.vmem_to_hbm [thread:$0]  %s1421, 32, %s1418, %s1407
        $region68: #{tpu_custom_call.1} parent=63 // pred_fallthru
          _
      $region64: #{tpu_custom_call.1} parent=5 // pred_fallthru
        _
      %p1424 = scmp.le.s32.totalorder 2, %s20
      // Predicated region
      $region69: #{tpu_custom_call.1} parent=5 // pred_check
        %p1425 = pneg %p1424
      $region70: #{tpu_custom_call.1} parent=5 // pred_check_branch
        %1427 = sbr.rel (%p1425) target = $region72
      $region71: #{tpu_custom_call.1} parent=5 // pred_region
        %s1428 = ssub.s32 %s20, 2
        // Predicated region
        $region73: #{tpu_custom_call.1} parent=71 // pred_check
          %p1429 = pneg %p285
        $region74: #{tpu_custom_call.1} parent=71 // pred_check_branch
          %1431 = sbr.rel (%p1429) target = $region76
        $region75: #{tpu_custom_call.1} parent=71 // pred_region
          %s1432 = sand.u32 %s270, 1
          %s1433 = scalar_lea.sflag [#allocation3], %s1432
          %s1434 = sand.u32 %s270, 1
          %s1435 = smul.addr %s1434, 2
          %s1436 = scalar_lea.vmem [#allocation2], %s1435
          %1437 = dma.done %s1433, 32
        $region76: #{tpu_custom_call.1} parent=71 // pred_fallthru
          _
      $region72: #{tpu_custom_call.1} parent=5 // pred_fallthru
        _
    $region6: #{tpu_custom_call.1} parent=1 // loop_footer
      %s24 = sadd.s32 1, %s20
    $region7: #{tpu_custom_call.1} parent=1 // loop_footer_branch
      %19 = sbr.rel target = $region3
    $region8: #{tpu_custom_call.1} parent=1 // loop_exit
      _
    %1438 = vsyncpa [#allocation3], 1
    %s1439 = scalar_lea.sflag [#allocation3], 1
    %1440 = vsyncpa %s1439, 1

</llo_original>
